<compile_context>
chip_gen: v5e
topology: v5e:2x2
jax: 0.10.0
libtpu: 0.0.40
codegen_flags: <defaults>
</compile_context>

<pallas_src>
import functools

import numpy as np
import jax
import jax.numpy as jnp
from jax import lax
from jax.experimental import pallas as pl
from jax.experimental.pallas import tpu as pltpu

_CONTRACT_LAST = (((1,), (1,)), ((), ()))   # (M, D) x (E, D) -> (M, E)


# ----------------------------------------------------------------- kernels ---
def _dot_kernel(x_ref, w_ref, o_ref):
    x = x_ref[0].astype(jnp.bfloat16)        # (Tq, D)
    w = w_ref[...].astype(jnp.bfloat16)      # (E, D)
    sims = lax.dot_general(x, w, _CONTRACT_LAST,
                           preferred_element_type=jnp.float32)   # (Tq, E) f32 acc
    o_ref[0] = sims.astype(o_ref.dtype)


def _cos_kernel(x_ref, w_ref, wn_ref, o_ref, *, eps):
    x32 = x_ref[0].astype(jnp.float32)       # (Tq, D)
    w = w_ref[...]                           # (E, D)
    wn = wn_ref[...]                         # (1, E)  per-entity L2 norms (f32)
    sims = lax.dot_general(x32.astype(jnp.bfloat16), w.astype(jnp.bfloat16),
                           _CONTRACT_LAST, preferred_element_type=jnp.float32)
    xn = jnp.sqrt(jnp.sum(x32 * x32, axis=-1, keepdims=True))     # (Tq, 1) VPU
    denom = jnp.maximum(xn * wn, eps)                             # torch eps clamp
    o_ref[0] = (sims * pl.reciprocal(denom, approx=True)).astype(o_ref.dtype)


# ----------------------------------------------------------------- wrapper ---
def static_entity_similarizer(padded_batch, entity_weights, *, sim="dot",
                              eps=1e-8, tq_max=256):
    """Pallas equivalent of StaticEntitySimilarizer.forward."""
    x = padded_batch
    squeeze_batch = (x.ndim == 2)
    if squeeze_batch:
        x = x[None]
    B, S, D = x.shape
    E = entity_weights.shape[0]

    # Full-sequence block when it is small; otherwise tile by a multiple of 8.
    Tq = S if S <= tq_max else tq_max
    grid = (B, pl.cdiv(S, Tq))

    x_spec = pl.BlockSpec((1, Tq, D), lambda b, q: (b, q, 0))
    w_spec = pl.BlockSpec((E, D), lambda b, q: (0, 0))        # constant -> single fetch
    o_spec = pl.BlockSpec((1, Tq, E), lambda b, q: (b, q, 0))
    out_shape = jax.ShapeDtypeStruct((B, S, E), x.dtype)
    params = pltpu.CompilerParams(dimension_semantics=("parallel", "parallel"))

    if sim == "dot":
        out = pl.pallas_call(
            _dot_kernel,
            out_shape=out_shape,
            grid_spec=pltpu.PrefetchScalarGridSpec(
                num_scalar_prefetch=0, grid=grid,
                in_specs=[x_spec, w_spec], out_specs=o_spec),
            compiler_params=params,
        )(x, entity_weights)
    elif sim == "cos":
        w32 = entity_weights.astype(jnp.float32)
        # Per-entity norms computed once per call (not per tile), shaped (1, E)
        # so they broadcast along lanes inside the kernel.
        wn_row = jnp.sqrt(jnp.sum(w32 * w32, axis=-1, keepdims=True)).T
        wn_spec = pl.BlockSpec((1, E), lambda b, q: (0, 0))
        out = pl.pallas_call(
            functools.partial(_cos_kernel, eps=eps),
            out_shape=out_shape,
            grid_spec=pltpu.PrefetchScalarGridSpec(
                num_scalar_prefetch=0, grid=grid,
                in_specs=[x_spec, w_spec, wn_spec], out_specs=o_spec),
            compiler_params=params,
        )(x, entity_weights, wn_row)
    else:
        raise ValueError(f"unsupported sim={sim!r}")

    if squeeze_batch:
        out = out[0]
    # torch: if len(padded_batch.shape) > len(output.shape): output.unsqueeze(-2)
    if padded_batch.ndim > out.ndim:
        out = out[..., None, :]
    return out


# --------------------------------------------------------- JAX references ----
def _ref_dot(x, w):
    return jnp.einsum("...d,ed->...e", x, w, precision=lax.Precision.HIGHEST)


def _ref_cos(x, w, eps=1e-8):
    num = jnp.einsum("...d,ed->...e", x, w, precision=lax.Precision.HIGHEST)
    xn = jnp.sqrt(jnp.sum(x * x, axis=-1, keepdims=True))
    wn = jnp.sqrt(jnp.sum(w * w, axis=-1))
    return num / jnp.maximum(xn * wn, eps)


# -------------------------------------------------------------------- main ---
if __name__ == "__main__":
    B, S, D, E = 2, 16, 32, 12   # batch, padded seq len, embedding dim, #entities

    key = jax.random.PRNGKey(0)
    kx, kw = jax.random.split(key)
    padded_batch = jax.random.normal(kx, (B, S, D), jnp.float32)
    entity_weights = jax.random.normal(kw, (E, D), jnp.float32)

    out_dot = static_entity_similarizer(padded_batch, entity_weights, sim="dot")
    out_cos = static_entity_similarizer(padded_batch, entity_weights, sim="cos")
    jax.block_until_ready((out_dot, out_cos))

    # bf16 MXU inputs (f32 accumulation) loosen the tolerance slightly vs the
    # full-f32 reference, as anticipated in the review.
    np.testing.assert_allclose(np.asarray(out_dot),
                               np.asarray(_ref_dot(padded_batch, entity_weights)),
                               rtol=2e-2, atol=5e-2)
    np.testing.assert_allclose(np.asarray(out_cos),
                               np.asarray(_ref_cos(padded_batch, entity_weights)),
                               rtol=2e-2, atol=2e-2)

    print("KERNEL_OK")
</pallas_src>

<mosaic_0001>
module attributes {stable_mosaic.version = 11 : i64} {
  func.func @_dot_kernel(%arg0: i32, %arg1: i32, %arg2: memref<1x16x32xf32, #tpu.memory_space<vmem>>, %arg3: memref<12x32xf32, #tpu.memory_space<vmem>>, %arg4: memref<1x16x12xf32, #tpu.memory_space<vmem>>) attributes {dimension_semantics = [#tpu.dimension_semantics<parallel>, #tpu.dimension_semantics<parallel>], iteration_bounds = array<i64: 2, 1>, scalar_prefetch = 0 : i64, scratch_operands = 0 : i64, tpu.core_type = #tpu.core_type<tc>, window_params = [{transform_indices = @transform_0, window_bounds = array<i64: 1, 16, 32>}, {pipeline_mode = #tpu.pipeline_mode<synchronous>, transform_indices = @transform_1, window_bounds = array<i64: 12, 32>}, {transform_indices = @transform_2, window_bounds = array<i64: 1, 16, 12>}]} {
    %c0 = arith.constant 0 : index
    %c0_0 = arith.constant 0 : index
    %c0_1 = arith.constant 0 : index
    %0 = vector.load %arg2[%c0, %c0_0, %c0_1] : memref<1x16x32xf32, #tpu.memory_space<vmem>>, vector<1x16x32xf32>
    %1 = vector.shape_cast %0 : vector<1x16x32xf32> to vector<16x32xf32>
    %2 = arith.truncf %1 : vector<16x32xf32> to vector<16x32xbf16>
    %c0_2 = arith.constant 0 : index
    %c0_3 = arith.constant 0 : index
    %3 = vector.load %arg3[%c0_2, %c0_3] : memref<12x32xf32, #tpu.memory_space<vmem>>, vector<12x32xf32>
    %4 = arith.truncf %3 : vector<12x32xf32> to vector<12x32xbf16>
    %cst = arith.constant dense<0.000000e+00> : vector<16x12xf32>
    %5 = tpu.matmul %2, %4, %cst {dimension_numbers = #tpu.dot_dimension_numbers<[1], [1], [0], [0], [0, 0, 1, 0], [], []>} : vector<16x32xbf16>, vector<12x32xbf16>, vector<16x12xf32> -> vector<16x12xf32>
    %c0_4 = arith.constant 0 : index
    %c0_5 = arith.constant 0 : index
    %c0_6 = arith.constant 0 : index
    %6 = vector.load %arg4[%c0_4, %c0_5, %c0_6] : memref<1x16x12xf32, #tpu.memory_space<vmem>>, vector<1x16x12xf32>
    %7 = vector.shape_cast %6 : vector<1x16x12xf32> to vector<16x12xf32>
    %8 = vector.shape_cast %5 : vector<16x12xf32> to vector<1x16x12xf32>
    tpu.vector_store %arg4[%c0_4, %c0_5, %c0_6], %8 {strides = array<i32>} : memref<1x16x12xf32, #tpu.memory_space<vmem>>, vector<1x16x12xf32>,
    return
  }
  func.func @transform_0(%arg0: i32, %arg1: i32) -> (i32, i32, i32) {
    %c0_i32 = arith.constant 0 : i32
    %c0_i32_0 = arith.constant 0 : i32
    return %arg0, %arg1, %c0_i32 : i32, i32, i32
  }
  func.func @transform_1(%arg0: i32, %arg1: i32) -> (i32, i32) {
    %c0_i32 = arith.constant 0 : i32
    %c0_i32_0 = arith.constant 0 : i32
    %c0_i32_1 = arith.constant 0 : i32
    return %c0_i32, %c0_i32_0 : i32, i32
  }
  func.func @transform_2(%arg0: i32, %arg1: i32) -> (i32, i32, i32) {
    %c0_i32 = arith.constant 0 : i32
    %c0_i32_0 = arith.constant 0 : i32
    return %arg0, %arg1, %c0_i32 : i32, i32, i32
  }
}

</mosaic_0001>

<llo_original>
// kernel: tpu_custom_call.1
$region0: #{tpu_custom_call.1}
  #allocation0 [shape = 'u32[]', space=smem, size = 0x4, offset = 0x4, fixed_abs, tag = 'smem constant byte address 0x4 - core index']
  #allocation1 [shape = 'u32[72,128]{1,0:T(1,128)}', space=vmem, size = 0x9000, scoped, tag = 'internal scratch']
  %s0 = inlined_call_operand.hbm [shape: f32[2,16,32], index: 0, kind: input, shape index: {}]
  %s1 = inlined_call_operand.hbm [shape: f32[12,32], index: 1, kind: input, shape index: {}]
  %s2 = inlined_call_operand.vmem [shape: f32[2,16,12], index: 2, kind: output, shape index: {}]
  %s3 = sld [smem:[#allocation0]]
  $region49: #{tpu_custom_call.1} parent=0
    _
  %s5 = ssub.s32 1, %s3
  %s6 = scalar_select 0, %s5, %s3
  $region1: #{tpu_custom_call.1} parent=0
    #allocation2 [shape = 'u8[16384]{0}', space=vmem, size = 0x4000, scoped, tag = 'input window, operand 0']
    #allocation3 [shape = 's32[2]{0}', space=sflag, size = 0x8, scoped, tag = 'scoped memory for tpu_custom_call.1']
    #allocation4 [shape = 'u8[8192]{0}', space=vmem, size = 0x2000, scoped, tag = 'input window, operand 1, single buffered']
    #allocation5 [shape = 's32[1]{0}', space=sflag, size = 0x4, scoped, tag = 'scoped memory for tpu_custom_call.1']
    %7 = vsyncpa [#allocation3], 0
    %s8 = scalar_lea.sflag [#allocation3], 1
    %9 = vsyncpa %s8, 0
    %10 = vsyncpa [#allocation5], 0
    loop: start=0, step=1, limit=4
    $region2: #{tpu_custom_call.1} parent=1 // loop_pre_header
      _
    $region3: #{tpu_custom_call.1} parent=1 // loop_header
      %s12 = sphi 0, %s16
      %p13 = scmp.ge.s32.totalorder %s12, 4
      %s19 = sphi 0, %s31
      %s20 = sphi 0, %s27
      %s21 = sphi 0, %s19
      %s22 = sphi 0, %s20
      %s23 = sphi 0, %s21
      %s24 = sphi 0, %s22
      %s36 = sphi 0, %s38
      %s39 = sphi 0, %s36
      %s40 = sphi 0, %s39
      %s56 = sphi 0, %s40
      %s60 = sphi 0, %s60
      %s62 = sphi 0, %s60
      %s63 = sphi 0, %s62
      %s77 = sphi 0, %s63
      %s85 = sphi 0, %s87
      %s88 = sphi 0, %s85
      %s89 = sphi 0, %s88
      %s105 = sphi 0, %s89
    $region4: #{tpu_custom_call.1} parent=1 // loop_header_branch
      %15 = sbr.rel (%p13) target = $region8
    $region5: #{tpu_custom_call.1} parent=1 // loop_body
      %s17 = ssub.s32 %s12, 1
      %s18 = ssub.s32 %s12, 2
      %s25 = sadd.s32 1, %s20
      %p26 = scmp.ge.s32.totalorder %s25, 1
      %s27 = scalar_select %p26, 0, %s25
      %s28 = sadd.s32 1, %s19
      %s29 = scalar_select %p26, %s28, %s19
      %p30 = scmp.ge.s32.totalorder %s29, 2
      %s31 = scalar_select %p30, 0, %s29
      %s32 = ssub.s32 %s19, %s31
      %s33 = ssub.s32 %s20, %s27
      %s34 = sor.u32 %s32, %s33
      %p35 = scmp.eq.s32.totalorder %s34, 0
      %s37 = sadd.s32 %s36, 1
      %s38 = scalar_select %p35, %s36, %s37
      %p41 = pneg %p35
      %p42 = scmp.eq.s32.totalorder %s12, 1
      %p43 = por %p41, %p42
      %p44 = scmp.ne.s32.totalorder %s36, %s39
      %p45 = scmp.eq.s32.totalorder %s12, 0
      %p46 = por %p44, %p45
      %p47 = scmp.ne.s32.totalorder %s36, %s39
      %p48 = scmp.eq.s32.totalorder %s17, 1
      %p49 = por %p47, %p48
      %p50 = scmp.ne.s32.totalorder %s39, %s40
      %p51 = scmp.eq.s32.totalorder %s17, 0
      %p52 = por %p50, %p51
      %p53 = scmp.ne.s32.totalorder %s39, %s40
      %p54 = scmp.eq.s32.totalorder %s18, 1
      %p55 = por %p53, %p54
      %p57 = scmp.ne.s32.totalorder %s40, %s56
      %p58 = scmp.eq.s32.totalorder %s18, 0
      %p59 = por %p57, %p58
      %s61 = sadd.s32 %s60, 1
      %p64 = scmp.eq.s32.totalorder %s12, 1
      %p65 = scmp.ne.s32.totalorder %s60, %s62
      %p66 = scmp.eq.s32.totalorder %s12, 0
      %p67 = por %p65, %p66
      %p68 = scmp.ne.s32.totalorder %s60, %s62
      %p69 = scmp.eq.s32.totalorder %s17, 1
      %p70 = por %p68, %p69
      %p71 = scmp.ne.s32.totalorder %s62, %s63
      %p72 = scmp.eq.s32.totalorder %s17, 0
      %p73 = por %p71, %p72
      %p74 = scmp.ne.s32.totalorder %s62, %s63
      %p75 = scmp.eq.s32.totalorder %s18, 1
      %p76 = por %p74, %p75
      %p78 = scmp.ne.s32.totalorder %s63, %s77
      %p79 = scmp.eq.s32.totalorder %s18, 0
      %p80 = por %p78, %p79
      %s81 = ssub.s32 %s19, %s31
      %s82 = ssub.s32 %s20, %s27
      %s83 = sor.u32 %s81, %s82
      %p84 = scmp.eq.s32.totalorder %s83, 0
      %s86 = sadd.s32 %s85, 1
      %s87 = scalar_select %p84, %s85, %s86
      %p90 = pneg %p84
      %p91 = scmp.eq.s32.totalorder %s12, 1
      %p92 = por %p90, %p91
      %p93 = scmp.ne.s32.totalorder %s85, %s88
      %p94 = scmp.eq.s32.totalorder %s12, 0
      %p95 = por %p93, %p94
      %p96 = scmp.ne.s32.totalorder %s85, %s88
      %p97 = scmp.eq.s32.totalorder %s17, 1
      %p98 = por %p96, %p97
      %p99 = scmp.ne.s32.totalorder %s88, %s89
      %p100 = scmp.eq.s32.totalorder %s17, 0
      %p101 = por %p99, %p100
      %p102 = scmp.ne.s32.totalorder %s88, %s89
      %p103 = scmp.eq.s32.totalorder %s18, 1
      %p104 = por %p102, %p103
      %p106 = scmp.ne.s32.totalorder %s89, %s105
      %p107 = scmp.eq.s32.totalorder %s18, 0
      %p108 = por %p106, %p107
      %p109 = scmp.le.s32.totalorder 1, %s12
      %p110 = scmp.lt.s32.totalorder %s12, 3
      %p111 = pnand %p109, %p110
      %p112 = pneg %p111
      // Predicated region
      $region9: #{tpu_custom_call.1} parent=5 // pred_check
        _
      $region10: #{tpu_custom_call.1} parent=5 // pred_check_branch
        %114 = sbr.rel (%p111) target = $region12
      $region11: #{tpu_custom_call.1} parent=5 // pred_region
        %s115 = ssub.s32 %s12, 1
        // Predicated region
        $region13: #{tpu_custom_call.1} parent=11 // pred_check
          %p116 = pneg %p73
        $region14: #{tpu_custom_call.1} parent=11 // pred_check_branch
          %118 = sbr.rel (%p116) target = $region16
        $region15: #{tpu_custom_call.1} parent=11 // pred_region
          %120 = vsyncadd [#allocation5], 0
          %s121 = sshll.u32 %s1, 4
          %s122 = int_to_ptr.hbm [resolvable:$true] %s121
          %s123 = sshll.u32 [#allocation4], 4
          %s124 = int_to_ptr.vmem [resolvable:$true] %s123
          %129 = dma.hbm_to_vmem [thread:$0]  %s122, 256, %s124, [#allocation5], 128, 128, 8
        $region16: #{tpu_custom_call.1} parent=11 // pred_fallthru
          _
      $region12: #{tpu_custom_call.1} parent=5 // pred_fallthru
        _
      %p130 = scmp.lt.s32.totalorder %s12, 2
      // Predicated region
      $region17: #{tpu_custom_call.1} parent=5 // pred_check
        %p131 = pneg %p130
      $region18: #{tpu_custom_call.1} parent=5 // pred_check_branch
        %133 = sbr.rel (%p131) target = $region20
      $region19: #{tpu_custom_call.1} parent=5 // pred_region
        // Predicated region
        $region21: #{tpu_custom_call.1} parent=19 // pred_check
          %p134 = pneg %p46
        $region22: #{tpu_custom_call.1} parent=19 // pred_check_branch
          %136 = sbr.rel (%p134) target = $region24
        $region23: #{tpu_custom_call.1} parent=19 // pred_region
          %s137 = sand.u32 %s36, 1
          %s138 = scalar_lea.sflag [#allocation3], %s137
          %s139 = sand.u32 %s36, 1
          %s140 = smul.addr %s139, 16
          %s141 = scalar_lea.vmem [#allocation2], %s140
          %s142 = smul.u32 2, %s20
          %144 = vsyncadd %s138, 0
          %s145 = smul.addr %s19, 2
          %s146 = sadd.s32 %s142, %s145
          %s147 = smul.addr %s146, 8
          %s148 = scalar_lea.hbm %s0, %s147
          %s149 = sshll.u32 %s148, 4
          %s150 = int_to_ptr.hbm [resolvable:$true] %s149
          %s151 = sshll.u32 %s141, 4
          %s152 = int_to_ptr.vmem [resolvable:$true] %s151
          %157 = dma.hbm_to_vmem [thread:$0]  %s150, 256, %s152, %s138, 128, 128, 8
        $region24: #{tpu_custom_call.1} parent=19 // pred_fallthru
          _
      $region20: #{tpu_custom_call.1} parent=5 // pred_fallthru
        _
      %p158 = scmp.le.s32.totalorder 1, %s12
      %p159 = scmp.lt.s32.totalorder %s12, 3
      %p160 = pnand %p158, %p159
      %p161 = pneg %p160
      // Predicated region
      $region25: #{tpu_custom_call.1} parent=5 // pred_check
        _
      $region26: #{tpu_custom_call.1} parent=5 // pred_check_branch
        %163 = sbr.rel (%p160) target = $region28
      $region27: #{tpu_custom_call.1} parent=5 // pred_region
        %s164 = ssub.s32 %s12, 1
        %s165 = sand.u32 %s39, 1
        %s166 = scalar_lea.sflag [#allocation3], %s165
        %s167 = sand.u32 %s39, 1
        %s168 = smul.addr %s167, 16
        %s169 = scalar_lea.vmem [#allocation2], %s168
        // Predicated region
        $region29: #{tpu_custom_call.1} parent=27 // pred_check
          %p170 = pneg %p52
        $region30: #{tpu_custom_call.1} parent=27 // pred_check_branch
          %172 = sbr.rel (%p170) target = $region32
        $region31: #{tpu_custom_call.1} parent=27 // pred_region
          %174 = dma.done %s166, 256
        $region32: #{tpu_custom_call.1} parent=27 // pred_fallthru
          _
        // Predicated region
        $region33: #{tpu_custom_call.1} parent=27 // pred_check
          %p175 = pneg %p73
        $region34: #{tpu_custom_call.1} parent=27 // pred_check_branch
          %177 = sbr.rel (%p175) target = $region36
        $region35: #{tpu_custom_call.1} parent=27 // pred_region
          %179 = dma.done [#allocation5], 256
        $region36: #{tpu_custom_call.1} parent=27 // pred_fallthru
          _
        %s180 = sand.u32 %s39, 1
        %s181 = scalar_lea.sflag [#allocation3], %s180
        %s182 = sand.u32 %s39, 1
        %s183 = smul.addr %s182, 16
        %s184 = scalar_lea.vmem [#allocation2], %s183
        %p185 = pneg %p52
        %p186 = pneg %p49
        %p187 = pneg %p73
        %p188 = pneg %p70
        %p189 = pneg %p101
        %p190 = pneg %p98
        %s191 = smul.u32 2, %s22
        %p192 = scmp.lt.s32.totalorder %s21, 1
        %s193 = scalar_select %p192, %s21, 1
        %p194 = scmp.lt.s32.totalorder %s191, 1
        %s195 = scalar_select %p194, %s191, 1
        %s196 = smul.addr %s193, 2
        %s197 = sadd.s32 %s195, %s196
        %s198 = smul.addr %s197, 8
        %s199 = scalar_lea.vmem %s2, %s198
        %s200 = smul.u32 2, %s22
        %s201 = smul.u32 2, %s22
        %p202 = scmp.lt.s32.totalorder %s21, 1
        %s203 = scalar_select %p202, %s21, 1
        %p204 = scmp.lt.s32.totalorder %s201, 1
        %s205 = scalar_select %p204, %s201, 1
        %s206 = smul.addr %s203, 2
        %s207 = sadd.s32 %s205, %s206
        %s208 = smul.addr %s207, 8
        %s209 = scalar_lea.vmem %s2, %s208
        %s210 = smul.u32 2, %s22
        %v212 = vld [vmem:[%s169] sm:$0xff]
        %v213 = vld [vmem:[%s169 + $0x8] sm:$0xff]
        %v214 = vpack.c.bf16 %v213, %v212
        %v215 = vld [vmem:[#allocation4] sm:$0xff]
        %v216 = vld [vmem:[#allocation4 + $0x8] sm:$0xf]
        %v217 = vpack.c.bf16 %v216, %v215
        %vm218 = vcmask 261120
        %v220 = vsel %vm218, %v214, 0
        %v223 = vsel %vm218, %v217, 0
        %225 = vmatpush.bf16.xpose.msra.mxu0 0
        %226 = vmatpush.bf16.xpose.msra.mxu0 0
        %227 = vmatpush.bf16.xpose.msra.mxu0 0
        %228 = vmatpush.bf16.xpose.msra.mxu0 0
        %229 = vmatpush.bf16.xpose.msra.mxu0 0
        %230 = vmatpush.bf16.xpose.msra.mxu0 0
        %231 = vmatpush.bf16.xpose.msra.mxu0 0
        %232 = vmatpush.bf16.xpose.msra.mxu0 %v223
        %233 = vmatmul.bf16.gmra.mxu0 %v220
        %v234 = vpop.f32.mrf.mxu0
        %v235 = vadd.f32 0.0, %v234
        %v236 = vpop.f32.mrf.mxu0
        %v237 = vadd.f32 0.0, %v236
        %238 = vdwg.mxu0
        %vm239 = vcmask 97280
        %240 = vst.msk [vmem:[%s209] sm:$0xff] %vm239, %v235
        %241 = vst.msk [vmem:[%s209 + $0x8] sm:$0xff] %vm239, %v237
        %s242 = smul.u32 2, %s22
        %p243 = scmp.lt.s32.totalorder %s21, 1
        %s244 = scalar_select %p243, %s21, 1
        %p245 = scmp.lt.s32.totalorder %s242, 1
        %s246 = scalar_select %p245, %s242, 1
        %s247 = smul.addr %s244, 2
        %s248 = sadd.s32 %s246, %s247
        %s249 = smul.addr %s248, 8
        %s250 = scalar_lea.vmem %s2, %s249
        // Predicated region
        $region37: #{tpu_custom_call.1} parent=27 // pred_check
          %p251 = pneg %p98
        $region38: #{tpu_custom_call.1} parent=27 // pred_check_branch
          %253 = sbr.rel (%p251) target = $region40
        $region39: #{tpu_custom_call.1} parent=27 // pred_region
          %s254 = smul.u32 2, %s22
        $region40: #{tpu_custom_call.1} parent=27 // pred_fallthru
          _
      $region28: #{tpu_custom_call.1} parent=5 // pred_fallthru
        _
      %p255 = scmp.le.s32.totalorder 2, %s12
      // Predicated region
      $region41: #{tpu_custom_call.1} parent=5 // pred_check
        %p256 = pneg %p255
      $region42: #{tpu_custom_call.1} parent=5 // pred_check_branch
        %258 = sbr.rel (%p256) target = $region44
      $region43: #{tpu_custom_call.1} parent=5 // pred_region
        %s259 = ssub.s32 %s12, 2
        // Predicated region
        $region45: #{tpu_custom_call.1} parent=43 // pred_check
          %p260 = pneg %p104
        $region46: #{tpu_custom_call.1} parent=43 // pred_check_branch
          %262 = sbr.rel (%p260) target = $region48
        $region47: #{tpu_custom_call.1} parent=43 // pred_region
          %s263 = smul.u32 2, %s24
          %p264 = scmp.lt.s32.totalorder %s23, 1
          %s265 = scalar_select %p264, %s23, 1
          %p266 = scmp.lt.s32.totalorder %s263, 1
          %s267 = scalar_select %p266, %s263, 1
          %s268 = smul.addr %s265, 2
          %s269 = sadd.s32 %s267, %s268
          %s270 = smul.addr %s269, 8
          %s271 = scalar_lea.vmem %s2, %s270
        $region48: #{tpu_custom_call.1} parent=43 // pred_fallthru
          _
      $region44: #{tpu_custom_call.1} parent=5 // pred_fallthru
        _
    $region6: #{tpu_custom_call.1} parent=1 // loop_footer
      %s16 = sadd.s32 1, %s12
    $region7: #{tpu_custom_call.1} parent=1 // loop_footer_branch
      %11 = sbr.rel target = $region3
    $region8: #{tpu_custom_call.1} parent=1 // loop_exit
      _
    %272 = vsyncpa [#allocation3], 1
    %s273 = scalar_lea.sflag [#allocation3], 1
    %274 = vsyncpa %s273, 1
    %275 = vsyncpa [#allocation5], 1

</llo_original>
